<compile_context>
chip_gen: v7x
topology: tpu7x:2x2x1
jax: 0.10.0
libtpu: 0.0.40
codegen_flags: <defaults>
</compile_context>

<pallas_src>
import jax
import jax.numpy as jnp
from jax.experimental import pallas as pl
from jax.experimental.pallas import tpu as pltpu


# ----------------------------- tuning knobs ---------------------------------

_LANE_CANDIDATES = (4096, 2048, 1024, 512, 256, 128)
_TARGET_BLOCK_BYTES = 4 << 20   # ~4 MiB per in/out buffer; double buffering
                                # keeps ~16 MiB of VMEM in flight.
_VMEM_LIMIT_BYTES = 32 << 20    # explicit scoped-VMEM limit: 4 MiB blocks x 4
                                # buffers would hit v5e's 16 MiB default limit
                                # exactly, and v7x only has 64 MiB physical.


# --------------------------- layout helpers ---------------------------------

def _sublane_multiple(dtype):
    """Native sublane packing multiple: 8 (f32), 16 (bf16/f16), 32 (int8/fp8)."""
    itemsize = jnp.dtype(dtype).itemsize
    return max(8, 8 * (4 // max(1, itemsize)))


def _choose_slab(n, dtype):
    """Pick a lane-dense 2-D slab (rows, lane) for a flat length-n tensor.

    Prefers a wide last dim (bigger unmasked DMAs/stores) while keeping at
    least one packed sublane group of rows.  Returns None for ragged sizes
    (n % 128 != 0); the caller falls back to a fused jnp expression instead of
    materializing a padded HBM copy.
    """
    sub = _sublane_multiple(dtype)
    widest = None
    for lane in _LANE_CANDIDATES:
        if n % lane == 0:
            if widest is None:
                widest = lane
            if n // lane >= sub:
                return n // lane, lane
    if widest is not None:            # small tensor: single short row block
        return n // widest, widest
    return None                        # ragged: no clean (rows, 128k) slab


def _choose_tile_rows(rows, lane, dtype):
    """Row tile sized to ~_TARGET_BLOCK_BYTES per buffer, dtype-aware multiple."""
    sub = _sublane_multiple(dtype)
    itemsize = jnp.dtype(dtype).itemsize
    target = _TARGET_BLOCK_BYTES // (lane * itemsize)
    target = max(sub, (target // sub) * sub)
    if target >= rows:
        return rows                    # single block == full dim (always legal)
    return target


def _as_static_float(coeff):
    """Return coeff as a Python float if it is compile-time constant, else None."""
    if isinstance(coeff, bool):
        return float(coeff)
    if isinstance(coeff, (int, float)):
        return float(coeff)
    try:
        return float(coeff)            # works for concrete scalar arrays
    except Exception:                  # tracers (jit / grad-traced coeff)
        return None


# ----------------------------- kernels ---------------------------------------

def _grl_bwd_kernel_smem(neg_coeff_ref, g_ref, o_ref):
    # traced coeff path: scalar-prefetch f32 in SMEM; scale in f32, cast back.
    o_ref[...] = (g_ref[...].astype(jnp.float32) * neg_coeff_ref[0]).astype(o_ref.dtype)


def _make_static_kernel(neg_coeff):
    # static coeff path: -coeff folded in as a compile-time constant.
    def kernel(g_ref, o_ref):
        o_ref[...] = (g_ref[...].astype(jnp.float32) * neg_coeff).astype(o_ref.dtype)
    return kernel


# ----------------------------- backward -------------------------------------

def _bwd_pallas(coeff, g):
    n = g.size
    dtype = g.dtype
    slab_dims = _choose_slab(n, dtype)

    if slab_dims is None:
        # TODO(synk): ragged (n % 128 != 0) case — a padded Pallas pass would
        # double HBM traffic; let XLA fuse the negate-scale instead.
        return ((-jnp.asarray(coeff, jnp.float32)) *
                g.astype(jnp.float32)).astype(dtype)

    rows, lane = slab_dims
    slab = g.reshape(rows, lane)
    tile_rows = _choose_tile_rows(rows, lane, dtype)
    num_tiles = pl.cdiv(rows, tile_rows)

    compiler_params = pltpu.CompilerParams(
        # Independent row tiles: pipelined double buffering + sharded across
        # TensorCores (2x on v7x dual-TC).  Default depth-2 buffering is kept;
        # VMEM is spent on larger blocks instead.
        dimension_semantics=("parallel",),
        vmem_limit_bytes=_VMEM_LIMIT_BYTES,
    )
    out_shape = jax.ShapeDtypeStruct((rows, lane), dtype)

    static_coeff = _as_static_float(coeff)
    if static_coeff is not None:
        # Compile-time constant: no SMEM operand, no per-step scalar load.
        out = pl.pallas_call(
            _make_static_kernel(-static_coeff),
            out_shape=out_shape,
            grid_spec=pltpu.PrefetchScalarGridSpec(
                num_scalar_prefetch=0,
                grid=(num_tiles,),
                in_specs=[pl.BlockSpec((tile_rows, lane), lambda i: (i, 0))],
                out_specs=pl.BlockSpec((tile_rows, lane), lambda i: (i, 0)),
            ),
            compiler_params=compiler_params,
        )(slab)
    else:
        # Traced coeff: keep it in f32 (never quantized to the grad dtype) and
        # hand it to the kernel via scalar prefetch (lands in SMEM).
        neg_coeff = (-jnp.asarray(coeff, jnp.float32)).reshape((1,))
        out = pl.pallas_call(
            _grl_bwd_kernel_smem,
            out_shape=out_shape,
            grid_spec=pltpu.PrefetchScalarGridSpec(
                num_scalar_prefetch=1,
                grid=(num_tiles,),
                in_specs=[pl.BlockSpec((tile_rows, lane), lambda i, nc: (i, 0))],
                out_specs=pl.BlockSpec((tile_rows, lane), lambda i, nc: (i, 0)),
            ),
            compiler_params=compiler_params,
        )(neg_coeff, slab)

    return out.reshape(g.shape)


# --------------------------- custom_vjp op ----------------------------------

@jax.custom_vjp
def gradient_reverse(x, coeff=1.0):
    # Forward is `input * 1.0` == identity: no kernel, zero extra HBM traffic.
    return x


def _grl_vjp_fwd(x, coeff):
    return x, coeff


def _grl_vjp_bwd(coeff, g):
    # Matches PyTorch: grad_input = grad_output.neg() * coeff.
    # coeff gets a zero cotangent (not None) to keep the pytree/aval structure
    # valid for jax.custom_vjp.
    dx = _bwd_pallas(coeff, g)
    dcoeff = jnp.zeros_like(jnp.asarray(coeff))
    return dx, dcoeff


gradient_reverse.defvjp(_grl_vjp_fwd, _grl_vjp_bwd)


class GradientReverseLayer:
    """JAX/Pallas equivalent of the PyTorch GradientReverseLayer (no params)."""

    def __call__(self, x, coeff=1.0):
        return gradient_reverse(x, coeff)


# ------------------------------ main ----------------------------------------

if __name__ == "__main__":
    key = jax.random.PRNGKey(0)
    x = jax.random.normal(key, (2, 4, 16, 16), dtype=jnp.float32)  # NCHW

    layer = GradientReverseLayer()

    # forward: identity (input * 1.0)
    y = layer(x, 1.0)
    jax.block_until_ready(y)
    assert y.shape == x.shape and y.dtype == x.dtype
    assert jnp.allclose(y, x), "forward must be identity"

    # backward, static Python-float coeff -> constant-folded Pallas kernel
    coeff = 0.5
    g1 = jax.grad(lambda a: jnp.sum(gradient_reverse(a, coeff) * 3.0))(x)
    jax.block_until_ready(g1)
    assert jnp.allclose(g1, jnp.full_like(x, -coeff * 3.0)), \
        "backward (static coeff) must reverse grads"

    # backward, traced coeff under jit -> scalar-prefetch (SMEM) Pallas kernel
    gfn = jax.jit(jax.grad(lambda a, c: jnp.sum(gradient_reverse(a, c) * 2.0)))
    g2 = gfn(x, jnp.float32(0.25))
    jax.block_until_ready(g2)
    assert jnp.allclose(g2, jnp.full_like(x, -0.25 * 2.0)), \
        "backward (traced coeff) must reverse grads"

    # bf16 gradients exercise the packed 16-sublane tiling path
    xb = x.astype(jnp.bfloat16)
    g3 = jax.grad(lambda a: jnp.sum(gradient_reverse(a, 0.5)))(xb)
    jax.block_until_ready(g3)
    assert g3.dtype == jnp.bfloat16
    assert jnp.allclose(g3.astype(jnp.float32), -0.5, atol=1e-2), \
        "backward (bf16) must reverse grads"

    # ragged tensor (numel % 128 != 0) takes the fused jnp fallback path
    xr = jax.random.normal(key, (3, 5), dtype=jnp.float32)
    g4 = jax.grad(lambda a: jnp.sum(gradient_reverse(a, 2.0)))(xr)
    jax.block_until_ready(g4)
    assert jnp.allclose(g4, -2.0), "backward (ragged fallback) must reverse grads"

    print("KERNEL_OK")
</pallas_src>

<mosaic_0001>
module attributes {stable_mosaic.version = 11 : i64} {
  func.func @kernel(%arg0: i32, %arg1: memref<8x256xf32, #tpu.memory_space<vmem>>, %arg2: memref<8x256xf32, #tpu.memory_space<vmem>>) attributes {dimension_semantics = [#tpu.dimension_semantics<parallel>], iteration_bounds = array<i64: 1>, scalar_prefetch = 0 : i64, scratch_operands = 0 : i64, tpu.core_type = #tpu.core_type<tc>, window_params = [{transform_indices = @transform_0, window_bounds = array<i64: 8, 256>}, {transform_indices = @transform_1, window_bounds = array<i64: 8, 256>}]} {
    %c0 = arith.constant 0 : index
    %c0_0 = arith.constant 0 : index
    %0 = vector.load %arg1[%c0, %c0_0] : memref<8x256xf32, #tpu.memory_space<vmem>>, vector<8x256xf32>
    %cst = arith.constant -5.000000e-01 : f32
    %1 = vector.broadcast %cst : f32 to vector<8x256xf32>
    %2 = arith.mulf %0, %1 : vector<8x256xf32>
    %c0_1 = arith.constant 0 : index
    %c0_2 = arith.constant 0 : index
    %3 = vector.load %arg2[%c0_1, %c0_2] : memref<8x256xf32, #tpu.memory_space<vmem>>, vector<8x256xf32>
    tpu.vector_store %arg2[%c0_1, %c0_2], %2 {strides = array<i32>} : memref<8x256xf32, #tpu.memory_space<vmem>>, vector<8x256xf32>,
    return
  }
  func.func @transform_0(%arg0: i32) -> (i32, i32) {
    %c0_i32 = arith.constant 0 : i32
    %c0_i32_0 = arith.constant 0 : i32
    return %arg0, %c0_i32 : i32, i32
  }
  func.func @transform_1(%arg0: i32) -> (i32, i32) {
    %c0_i32 = arith.constant 0 : i32
    %c0_i32_0 = arith.constant 0 : i32
    return %arg0, %c0_i32 : i32, i32
  }
}

</mosaic_0001>

<llo_original>
// kernel: tpu_custom_call.1
$region0: #{tpu_custom_call.1}
  #allocation0 [shape = 'u32[]', space=smem, size = 0x4, offset = 0x4, fixed_abs, tag = 'smem constant byte address 0x4 - core index']
  #allocation1 [shape = 'u32[144,128]{1,0:T(1,128)}', space=vmem, size = 0x12000, scoped, tag = 'internal scratch']
  %s0 = inlined_call_operand.hbm [shape: f32[8,256], index: 0, kind: input, shape index: {}]
  %s1 = inlined_call_operand.hbm [shape: f32[8,256], index: 1, kind: output, shape index: {}]
  %s2 = sld [smem:[#allocation0]]
  $region18: #{tpu_custom_call.1} parent=0
    _
  %s4 = ssub.s32 1, %s2
  %s5 = scalar_select 0, %s4, %s2
  $region1: #{tpu_custom_call.1} parent=0
    #allocation2 [shape = 'u8[8192]{0}', space=vmem, size = 0x2000, scoped, tag = 'input window, operand 0, single buffered']
    #allocation3 [shape = 's32[1]{0}', space=sflag, size = 0x4, scoped, tag = 'scoped memory for tpu_custom_call.1']
    #allocation4 [shape = 's32[1]{0}', space=sflag, size = 0x4, scoped, tag = 'scoped memory for tpu_custom_call.1']
    #allocation5 [shape = 'u8[8192]{0}', space=vmem, size = 0x2000, scoped, tag = 'output window, operand 0, single buffered']
    %6 = vsyncpa [#allocation3], 0
    %7 = vsyncpa [#allocation4], 0
    // Predicated region
    $region2: #{tpu_custom_call.1} parent=1 // pred_check
      _
    $region3: #{tpu_custom_call.1} parent=1 // pred_check_branch
      %9 = sbr.rel (0) target = $region5
    $region4: #{tpu_custom_call.1} parent=1 // pred_region
      %s11 = ssub.s32 256, 256
      %12 = vsyncadd [#allocation3], %s11
      %s14 = sshll.u32 [#allocation2], 4
      %s15 = int_to_ptr.vmem [resolvable:$true] %s14
      %17 = dma.hbm_to_vmem [thread:$0]  %s0, 256, %s15, [#allocation3]
    $region5: #{tpu_custom_call.1} parent=1 // pred_fallthru
      _
    // Predicated region
    $region6: #{tpu_custom_call.1} parent=1 // pred_check
      _
    $region7: #{tpu_custom_call.1} parent=1 // pred_check_branch
      %19 = sbr.rel (0) target = $region9
    $region8: #{tpu_custom_call.1} parent=1 // pred_region
      %20 = dma.done [#allocation3], 256
    $region9: #{tpu_custom_call.1} parent=1 // pred_fallthru
      _
    %v21 = vld [vmem:[#allocation2] sm:$0xff]
    %v22 = vld [vmem:[#allocation2 + $0x8] sm:$0xff]
    %v23 = vmul.f32 %v21, -0.5
    %v24 = vmul.f32 %v22, -0.5
    %25 = vst [vmem:[#allocation5] sm:$0xff] %v23
    %26 = vst [vmem:[#allocation5 + $0x8] sm:$0xff] %v24
    // Predicated region
    $region10: #{tpu_custom_call.1} parent=1 // pred_check
      _
    $region11: #{tpu_custom_call.1} parent=1 // pred_check_branch
      %28 = sbr.rel (0) target = $region13
    $region12: #{tpu_custom_call.1} parent=1 // pred_region
      %s30 = ssub.s32 256, 256
      %31 = vsyncadd [#allocation4], %s30
      %s33 = sshll.u32 [#allocation5], 4
      %s34 = int_to_ptr.vmem [resolvable:$true] %s33
      %36 = dma.vmem_to_hbm [thread:$0]  %s34, 256, %s1, [#allocation4]
    $region13: #{tpu_custom_call.1} parent=1 // pred_fallthru
      _
    // Predicated region
    $region14: #{tpu_custom_call.1} parent=1 // pred_check
      _
    $region15: #{tpu_custom_call.1} parent=1 // pred_check_branch
      %38 = sbr.rel (0) target = $region17
    $region16: #{tpu_custom_call.1} parent=1 // pred_region
      %39 = dma.done [#allocation4], 256
    $region17: #{tpu_custom_call.1} parent=1 // pred_fallthru
      _
    %40 = vsyncpa [#allocation3], 1
    %41 = vsyncpa [#allocation4], 1

</llo_original>
